<compile_context>
chip_gen: v7x
topology: tpu7x:2x2x1
jax: 0.10.0
libtpu: 0.0.40
codegen_flags: <defaults>
</compile_context>

<pallas_src>
import math
from functools import partial

import jax
import jax.numpy as jnp
from jax.experimental import pallas as pl
from jax.experimental.pallas import tpu as pltpu

BN_EPS = 1e-5


def _round_up(x, m):
    return ((x + m - 1) // m) * m


def base_regressor_kernel(z_ref, w1_ref, b1_ref, gamma_ref, beta_ref,
                          w2_ref, b2_ref, y_ref,
                          sum_ref, sumsq_ref, scale_ref, shift_ref, *h_cache,
                          batch, b_pad, tile_b, cache_h):
    p = pl.program_id(0)   # 0: fc1 + batch-stat accumulation, 1: normalize + fc2
    i = pl.program_id(1)   # batch-tile index
    hc = h_cache[0] if cache_h else None

    @pl.when(p == 0)
    def _pass0():
        # fc1 on the MXU; run exactly once per tile when the h-cache is on.
        h = jnp.dot(z_ref[...], w1_ref[...],
                    preferred_element_type=jnp.float32) + b1_ref[...]   # (TB, 128)

        @pl.when(i == 0)
        def _init_stats():
            sum_ref[...] = jnp.zeros_like(sum_ref)
            sumsq_ref[...] = jnp.zeros_like(sumsq_ref)

        # No per-tile padding mask: zero-padded z rows contribute exactly b1
        # (and b1^2) to the sums; corrected analytically at finalize time.
        sum_ref[...] += jnp.sum(h, axis=0, keepdims=True)
        sumsq_ref[...] += jnp.sum(h * h, axis=0, keepdims=True)

        if cache_h:
            start = pl.multiple_of(i * tile_b, tile_b)
            hc[pl.ds(start, tile_b), :] = h

    @pl.when(p == 1)
    def _pass1():
        @pl.when(i == 0)
        def _finalize_stats():
            n_pad = float(b_pad - batch)
            b1 = b1_ref[...]
            s = sum_ref[...] - n_pad * b1
            ss = sumsq_ref[...] - n_pad * (b1 * b1)
            inv_n = 1.0 / float(batch)
            mean = s * inv_n                                          # (1, 128)
            var = jnp.maximum(ss * inv_n - mean * mean, 0.0)          # biased var
            scale = gamma_ref[...] * jax.lax.rsqrt(var + BN_EPS)
            scale_ref[...] = scale
            shift_ref[...] = beta_ref[...] - mean * scale

        if cache_h:
            start = pl.multiple_of(i * tile_b, tile_b)
            h = hc[pl.ds(start, tile_b), :]
        else:
            h = jnp.dot(z_ref[...], w1_ref[...],
                        preferred_element_type=jnp.float32) + b1_ref[...]

        h_act = jnp.maximum(h * scale_ref[...] + shift_ref[...], 0.0)  # BN + ReLU

        # fc2 as a lane-dense row: (8, HP) x (TB, HP)^T -> (8, TB); take row 0.
        y_all = jax.lax.dot_general(
            w2_ref[...], h_act,
            dimension_numbers=(((1,), (1,)), ((), ())),
            preferred_element_type=jnp.float32)                        # (8, TB)
        y_row = y_all[0:1, :] + b2_ref[...]                            # (1, TB)
        y_ref[...] = y_row.reshape(1, 1, tile_b)


def _vmem_limit_bytes():
    """Per-generation scoped-VMEM budget: ~3/4 of physical, capped."""
    try:
        phys = int(pltpu.get_tpu_info().vmem_capacity_bytes)
    except Exception:
        phys = 64 << 20          # conservative default (v7x has 64 MiB per TC)
    return int(min(max(32 << 20, (phys * 3) // 4), 100 << 20))


def base_regressor_forward(z, params, *, tile_b=None, cache_h=None):
    """z: (B, latent_dim) float32 -> (B, 1) float32 (training-mode BN semantics)."""
    B, D = z.shape
    HP = params["w1"].shape[1]          # padded hidden width (128)

    vmem_limit = _vmem_limit_bytes()

    if tile_b is None:
        # Large tiles amortize the ~0.35us per-grid-step overhead; the z tile
        # only has to stay inside the double-buffered input budget.
        tile_b = 2048
        while tile_b > 128 and 2 * tile_b * D * 4 > (8 << 20):
            tile_b //= 2
    tile_b = min(tile_b, _round_up(B, 8))
    if tile_b >= 128:
        tile_b = _round_up(tile_b, 128)       # unmasked lane-dense output stores
    else:
        tile_b = max(8, _round_up(tile_b, 8))

    num_tiles = pl.cdiv(B, tile_b)
    b_pad = num_tiles * tile_b
    z_p = z if b_pad == B else jnp.pad(z, ((0, b_pad - B), (0, 0)))

    # h-cache gate: weights + double-buffered z/out streams + cache must fit.
    weights_bytes = (D * HP + 4 * HP + 8 * HP + 1) * 4
    stream_bytes = 2 * (tile_b * D + tile_b) * 4
    h_cache_bytes = b_pad * HP * 4
    if cache_h is None:
        cache_h = h_cache_bytes <= vmem_limit - weights_bytes - stream_bytes - (4 << 20)
    cache_h = bool(cache_h)

    # Pre-broadcast w2 rows on the host (JAX does not CSE broadcast_in_dim in
    # the kernel); done once per call, not per grid step.
    w2_b = jnp.broadcast_to(params["w2"], (8, HP))

    kernel = partial(base_regressor_kernel, batch=B, b_pad=b_pad,
                     tile_b=tile_b, cache_h=cache_h)

    fc1_passes = 1 if cache_h else 2
    cost = pl.CostEstimate(
        flops=int(2 * fc1_passes * b_pad * D * HP + 2 * 8 * b_pad * HP
                  + 6 * b_pad * HP),
        transcendentals=int(HP),
        bytes_accessed=int(fc1_passes * b_pad * D * 4 + weights_bytes + b_pad * 4),
    )

    if cache_h:
        z_index_map = lambda p, i: (i * (1 - p), 0)   # pass 1 never re-DMAs z
    else:
        z_index_map = lambda p, i: (i, 0)

    scratch_shapes = [pltpu.VMEM((1, HP), jnp.float32),     # sum(h)
                      pltpu.VMEM((1, HP), jnp.float32),     # sum(h^2)
                      pltpu.VMEM((1, HP), jnp.float32),     # BN scale
                      pltpu.VMEM((1, HP), jnp.float32)]     # BN shift
    if cache_h:
        scratch_shapes.append(pltpu.VMEM((b_pad, HP), jnp.float32))  # h cache

    out = pl.pallas_call(
        kernel,
        out_shape=jax.ShapeDtypeStruct((num_tiles, 1, tile_b), jnp.float32),
        grid_spec=pltpu.PrefetchScalarGridSpec(
            num_scalar_prefetch=0,
            grid=(2, num_tiles),
            in_specs=[
                pl.BlockSpec((tile_b, D), z_index_map),           # z tile (streamed)
                pl.BlockSpec((D, HP), lambda p, i: (0, 0)),       # w1 (resident)
                pl.BlockSpec((1, HP), lambda p, i: (0, 0)),       # b1
                pl.BlockSpec((1, HP), lambda p, i: (0, 0)),       # gamma
                pl.BlockSpec((1, HP), lambda p, i: (0, 0)),       # beta
                pl.BlockSpec((8, HP), lambda p, i: (0, 0)),       # w2 rows (pre-broadcast)
                pl.BlockSpec((1, 1), lambda p, i: (0, 0)),        # b2
            ],
            # i*p: pass 0 keeps output block 0 resident -> no garbage writebacks.
            out_specs=pl.BlockSpec((1, 1, tile_b), lambda p, i: (i * p, 0, 0)),
            scratch_shapes=scratch_shapes,
        ),
        compiler_params=pltpu.CompilerParams(
            # Both grid axes carry the cross-tile BN-stats dependency
            # (accumulate-then-normalize), so neither may be split across cores.
            dimension_semantics=("arbitrary", "arbitrary"),
            vmem_limit_bytes=vmem_limit,
        ),
        cost_estimate=cost,
    )(z_p, params["w1"], params["b1"], params["gamma"], params["beta"],
      w2_b, params["b2"])

    return out.reshape(b_pad, 1)[:B]


def init_params(key, latent_dim, hidden=64, hidden_pad=128):
    """PyTorch-default init (U(-1/sqrt(fan_in), 1/sqrt(fan_in))), stored
    pre-transposed as (in, out) and zero-padded to a lane-full hidden width."""
    k1, k2, k3, k4 = jax.random.split(key, 4)
    bound1 = 1.0 / math.sqrt(latent_dim)
    bound2 = 1.0 / math.sqrt(hidden)
    pad = hidden_pad - hidden
    w1 = jax.random.uniform(k1, (latent_dim, hidden), jnp.float32, -bound1, bound1)
    b1 = jax.random.uniform(k2, (1, hidden), jnp.float32, -bound1, bound1)
    w2 = jax.random.uniform(k3, (1, hidden), jnp.float32, -bound2, bound2)  # row form
    b2 = jax.random.uniform(k4, (1, 1), jnp.float32, -bound2, bound2)
    return {
        "w1": jnp.pad(w1, ((0, 0), (0, pad))),
        "b1": jnp.pad(b1, ((0, 0), (0, pad))),
        "gamma": jnp.pad(jnp.ones((1, hidden), jnp.float32), ((0, 0), (0, pad))),
        "beta": jnp.zeros((1, hidden_pad), jnp.float32),
        "w2": jnp.pad(w2, ((0, 0), (0, pad))),
        "b2": b2,
    }


def reference_forward(z, params):
    """Plain-JAX reference (padded channels are numerically inert)."""
    h = z @ params["w1"] + params["b1"]
    mean = jnp.mean(h, axis=0, keepdims=True)
    var = jnp.mean((h - mean) ** 2, axis=0, keepdims=True)
    h = (h - mean) * jax.lax.rsqrt(var + BN_EPS)
    h = h * params["gamma"] + params["beta"]
    h = jnp.maximum(h, 0.0)
    return h @ params["w2"].T + params["b2"]


if __name__ == "__main__":
    key = jax.random.PRNGKey(0)
    kz, kp, kz2, kz3 = jax.random.split(key, 4)

    # Test 1: small, single tile, h-cache path.
    B, latent_dim = 8, 32
    z = jax.random.normal(kz, (B, latent_dim), jnp.float32)
    params = init_params(kp, latent_dim)
    y = jax.block_until_ready(base_regressor_forward(z, params))
    y_ref = reference_forward(z, params)
    assert y.shape == (B, 1)
    assert jnp.allclose(y, y_ref, atol=1e-4, rtol=1e-4), "mismatch vs reference (B=8)"

    # Test 2: non-divisible batch -> multi-tile grid + analytic padded-row
    # correction, h-cache path.
    B2 = 20
    z2 = jax.random.normal(kz2, (B2, latent_dim), jnp.float32)
    y2 = jax.block_until_ready(base_regressor_forward(z2, params, tile_b=16))
    y2_ref = reference_forward(z2, params)
    assert y2.shape == (B2, 1)
    assert jnp.allclose(y2, y2_ref, atol=1e-4, rtol=1e-4), "mismatch vs reference (B=20)"

    # Test 3: larger multi-tile batch, forced fallback path (no h-cache,
    # fc1 recomputed in pass 1) to exercise the VMEM-gated fallback.
    B3 = 300
    z3 = jax.random.normal(kz3, (B3, latent_dim), jnp.float32)
    y3 = jax.block_until_ready(
        base_regressor_forward(z3, params, tile_b=128, cache_h=False))
    y3_ref = reference_forward(z3, params)
    assert y3.shape == (B3, 1)
    assert jnp.allclose(y3, y3_ref, atol=1e-4, rtol=1e-4), "mismatch vs reference (B=300)"

    print("KERNEL_OK")
</pallas_src>

<mosaic_0001>
module attributes {stable_mosaic.version = 11 : i64} {
  func.func @base_regressor_kernel(%arg0: i32, %arg1: i32, %arg2: memref<8x32xf32, #tpu.memory_space<vmem>>, %arg3: memref<32x128xf32, #tpu.memory_space<vmem>>, %arg4: memref<1x128xf32, #tpu.memory_space<vmem>>, %arg5: memref<1x128xf32, #tpu.memory_space<vmem>>, %arg6: memref<1x128xf32, #tpu.memory_space<vmem>>, %arg7: memref<8x128xf32, #tpu.memory_space<vmem>>, %arg8: memref<1x1xf32, #tpu.memory_space<vmem>>, %arg9: memref<1x1x8xf32, #tpu.memory_space<vmem>>, %arg10: memref<1x128xf32, #tpu.memory_space<vmem>>, %arg11: memref<1x128xf32, #tpu.memory_space<vmem>>, %arg12: memref<1x128xf32, #tpu.memory_space<vmem>>, %arg13: memref<1x128xf32, #tpu.memory_space<vmem>>, %arg14: memref<8x128xf32, #tpu.memory_space<vmem>>) attributes {dimension_semantics = [#tpu.dimension_semantics<arbitrary>, #tpu.dimension_semantics<arbitrary>], iteration_bounds = array<i64: 2, 1>, scalar_prefetch = 0 : i64, scratch_operands = 5 : i64, tpu.core_type = #tpu.core_type<tc>, window_params = [{transform_indices = @transform_0, window_bounds = array<i64: 8, 32>}, {pipeline_mode = #tpu.pipeline_mode<synchronous>, transform_indices = @transform_1, window_bounds = array<i64: 32, 128>}, {pipeline_mode = #tpu.pipeline_mode<synchronous>, transform_indices = @transform_2, window_bounds = array<i64: 1, 128>}, {pipeline_mode = #tpu.pipeline_mode<synchronous>, transform_indices = @transform_3, window_bounds = array<i64: 1, 128>}, {pipeline_mode = #tpu.pipeline_mode<synchronous>, transform_indices = @transform_4, window_bounds = array<i64: 1, 128>}, {pipeline_mode = #tpu.pipeline_mode<synchronous>, transform_indices = @transform_5, window_bounds = array<i64: 8, 128>}, {pipeline_mode = #tpu.pipeline_mode<synchronous>, transform_indices = @transform_6, window_bounds = array<i64: 1, 1>}, {transform_indices = @transform_7, window_bounds = array<i64: 1, 1, 8>}]} {
    %c0_i32 = arith.constant 0 : i32
    %0 = arith.cmpi eq, %arg0, %c0_i32 : i32
    %1 = arith.extui %0 : i1 to i32
    %c0_i32_0 = arith.constant 0 : i32
    %2 = arith.cmpi ne, %1, %c0_i32_0 : i32
    scf.if %2 {
      %c0 = arith.constant 0 : index
      %c0_2 = arith.constant 0 : index
      %6 = vector.load %arg2[%c0, %c0_2] : memref<8x32xf32, #tpu.memory_space<vmem>>, vector<8x32xf32>
      %c0_3 = arith.constant 0 : index
      %c0_4 = arith.constant 0 : index
      %7 = vector.load %arg3[%c0_3, %c0_4] : memref<32x128xf32, #tpu.memory_space<vmem>>, vector<32x128xf32>
      %cst = arith.constant dense<0.000000e+00> : vector<8x128xf32>
      %8 = tpu.matmul %6, %7, %cst {dimension_numbers = #tpu.dot_dimension_numbers<[1], [0], [0], [1], [0, 0, 1, 1], [], []>} : vector<8x32xf32>, vector<32x128xf32>, vector<8x128xf32> -> vector<8x128xf32>
      %c0_5 = arith.constant 0 : index
      %c0_6 = arith.constant 0 : index
      %9 = vector.load %arg4[%c0_5, %c0_6] : memref<1x128xf32, #tpu.memory_space<vmem>>, vector<1x128xf32>
      %10 = vector.broadcast %9 : vector<1x128xf32> to vector<8x128xf32>
      %11 = arith.addf %8, %10 : vector<8x128xf32>
      %c0_i32_7 = arith.constant 0 : i32
      %12 = arith.cmpi eq, %arg1, %c0_i32_7 : i32
      %13 = arith.extui %12 : i1 to i32
      %c0_i32_8 = arith.constant 0 : i32
      %14 = arith.cmpi ne, %13, %c0_i32_8 : i32
      scf.if %14 {
        %cst_20 = arith.constant 0.000000e+00 : f32
        %30 = vector.broadcast %cst_20 : f32 to vector<1x128xf32>
        %c0_21 = arith.constant 0 : index
        %c0_22 = arith.constant 0 : index
        %31 = vector.load %arg10[%c0_21, %c0_22] : memref<1x128xf32, #tpu.memory_space<vmem>>, vector<1x128xf32>
        tpu.vector_store %arg10[%c0_21, %c0_22], %30 {strides = array<i32>} : memref<1x128xf32, #tpu.memory_space<vmem>>, vector<1x128xf32>,
        %cst_23 = arith.constant 0.000000e+00 : f32
        %32 = vector.broadcast %cst_23 : f32 to vector<1x128xf32>
        %c0_24 = arith.constant 0 : index
        %c0_25 = arith.constant 0 : index
        %33 = vector.load %arg11[%c0_24, %c0_25] : memref<1x128xf32, #tpu.memory_space<vmem>>, vector<1x128xf32>
        tpu.vector_store %arg11[%c0_24, %c0_25], %32 {strides = array<i32>} : memref<1x128xf32, #tpu.memory_space<vmem>>, vector<1x128xf32>,
      } else {
      }
      %c0_9 = arith.constant 0 : index
      %c0_10 = arith.constant 0 : index
      %15 = vector.load %arg10[%c0_9, %c0_10] : memref<1x128xf32, #tpu.memory_space<vmem>>, vector<1x128xf32>
      %cst_11 = arith.constant dense<0.000000e+00> : vector<128xf32>
      %16 = vector.multi_reduction <add>, %11, %cst_11 [0] : vector<8x128xf32> to vector<128xf32>
      %17 = vector.shape_cast %16 : vector<128xf32> to vector<1x128xf32>
      %18 = arith.addf %15, %17 : vector<1x128xf32>
      %c0_12 = arith.constant 0 : index
      %c0_13 = arith.constant 0 : index
      %19 = vector.load %arg10[%c0_12, %c0_13] : memref<1x128xf32, #tpu.memory_space<vmem>>, vector<1x128xf32>
      tpu.vector_store %arg10[%c0_12, %c0_13], %18 {strides = array<i32>} : memref<1x128xf32, #tpu.memory_space<vmem>>, vector<1x128xf32>,
      %c0_14 = arith.constant 0 : index
      %c0_15 = arith.constant 0 : index
      %20 = vector.load %arg11[%c0_14, %c0_15] : memref<1x128xf32, #tpu.memory_space<vmem>>, vector<1x128xf32>
      %21 = arith.mulf %11, %11 : vector<8x128xf32>
      %cst_16 = arith.constant dense<0.000000e+00> : vector<128xf32>
      %22 = vector.multi_reduction <add>, %21, %cst_16 [0] : vector<8x128xf32> to vector<128xf32>
      %23 = vector.shape_cast %22 : vector<128xf32> to vector<1x128xf32>
      %24 = arith.addf %20, %23 : vector<1x128xf32>
      %c0_17 = arith.constant 0 : index
      %c0_18 = arith.constant 0 : index
      %25 = vector.load %arg11[%c0_17, %c0_18] : memref<1x128xf32, #tpu.memory_space<vmem>>, vector<1x128xf32>
      tpu.vector_store %arg11[%c0_17, %c0_18], %24 {strides = array<i32>} : memref<1x128xf32, #tpu.memory_space<vmem>>, vector<1x128xf32>,
      %c8_i32 = arith.constant 8 : i32
      %26 = arith.muli %arg1, %c8_i32 : i32
      %27 = tpu.assume_multiple %26, 8 : i32
      %28 = arith.index_cast %27 : i32 to index
      %c0_19 = arith.constant 0 : index
      %29 = vector.load %arg14[%28, %c0_19] : memref<8x128xf32, #tpu.memory_space<vmem>>, vector<8x128xf32>
      tpu.vector_store %arg14[%28, %c0_19], %11 {strides = array<i32>} : memref<8x128xf32, #tpu.memory_space<vmem>>, vector<8x128xf32>,
    } else {
    }
    %c1_i32 = arith.constant 1 : i32
    %3 = arith.cmpi eq, %arg0, %c1_i32 : i32
    %4 = arith.extui %3 : i1 to i32
    %c0_i32_1 = arith.constant 0 : i32
    %5 = arith.cmpi ne, %4, %c0_i32_1 : i32
    scf.if %5 {
      %c0_i32_2 = arith.constant 0 : i32
      %6 = arith.cmpi eq, %arg1, %c0_i32_2 : i32
      %7 = arith.extui %6 : i1 to i32
      %c0_i32_3 = arith.constant 0 : i32
      %8 = arith.cmpi ne, %7, %c0_i32_3 : i32
      scf.if %8 {
        %c0_16 = arith.constant 0 : index
        %c0_17 = arith.constant 0 : index
        %29 = vector.load %arg4[%c0_16, %c0_17] : memref<1x128xf32, #tpu.memory_space<vmem>>, vector<1x128xf32>
        %c0_18 = arith.constant 0 : index
        %c0_19 = arith.constant 0 : index
        %30 = vector.load %arg10[%c0_18, %c0_19] : memref<1x128xf32, #tpu.memory_space<vmem>>, vector<1x128xf32>
        %cst_20 = arith.constant 0.000000e+00 : f32
        %31 = vector.broadcast %cst_20 : f32 to vector<1x128xf32>
        %32 = arith.mulf %31, %29 : vector<1x128xf32>
        %33 = arith.subf %30, %32 : vector<1x128xf32>
        %c0_21 = arith.constant 0 : index
        %c0_22 = arith.constant 0 : index
        %34 = vector.load %arg11[%c0_21, %c0_22] : memref<1x128xf32, #tpu.memory_space<vmem>>, vector<1x128xf32>
        %35 = arith.mulf %29, %29 : vector<1x128xf32>
        %cst_23 = arith.constant 0.000000e+00 : f32
        %36 = vector.broadcast %cst_23 : f32 to vector<1x128xf32>
        %37 = arith.mulf %36, %35 : vector<1x128xf32>
        %38 = arith.subf %34, %37 : vector<1x128xf32>
        %cst_24 = arith.constant 1.250000e-01 : f32
        %39 = vector.broadcast %cst_24 : f32 to vector<1x128xf32>
        %40 = arith.mulf %33, %39 : vector<1x128xf32>
        %cst_25 = arith.constant 1.250000e-01 : f32
        %41 = vector.broadcast %cst_25 : f32 to vector<1x128xf32>
        %42 = arith.mulf %38, %41 : vector<1x128xf32>
        %43 = arith.mulf %40, %40 : vector<1x128xf32>
        %44 = arith.subf %42, %43 : vector<1x128xf32>
        %cst_26 = arith.constant 0.000000e+00 : f32
        %45 = vector.broadcast %cst_26 : f32 to vector<1x128xf32>
        %46 = arith.maximumf %44, %45 : vector<1x128xf32>
        %c0_27 = arith.constant 0 : index
        %c0_28 = arith.constant 0 : index
        %47 = vector.load %arg5[%c0_27, %c0_28] : memref<1x128xf32, #tpu.memory_space<vmem>>, vector<1x128xf32>
        %cst_29 = arith.constant 9.99999974E-6 : f32
        %48 = vector.broadcast %cst_29 : f32 to vector<1x128xf32>
        %49 = arith.addf %46, %48 : vector<1x128xf32>
        %50 = math.rsqrt %49 : vector<1x128xf32>
        %51 = arith.mulf %47, %50 : vector<1x128xf32>
        %c0_30 = arith.constant 0 : index
        %c0_31 = arith.constant 0 : index
        %52 = vector.load %arg12[%c0_30, %c0_31] : memref<1x128xf32, #tpu.memory_space<vmem>>, vector<1x128xf32>
        tpu.vector_store %arg12[%c0_30, %c0_31], %51 {strides = array<i32>} : memref<1x128xf32, #tpu.memory_space<vmem>>, vector<1x128xf32>,
        %c0_32 = arith.constant 0 : index
        %c0_33 = arith.constant 0 : index
        %53 = vector.load %arg6[%c0_32, %c0_33] : memref<1x128xf32, #tpu.memory_space<vmem>>, vector<1x128xf32>
        %54 = arith.mulf %40, %51 : vector<1x128xf32>
        %55 = arith.subf %53, %54 : vector<1x128xf32>
        %c0_34 = arith.constant 0 : index
        %c0_35 = arith.constant 0 : index
        %56 = vector.load %arg13[%c0_34, %c0_35] : memref<1x128xf32, #tpu.memory_space<vmem>>, vector<1x128xf32>
        tpu.vector_store %arg13[%c0_34, %c0_35], %55 {strides = array<i32>} : memref<1x128xf32, #tpu.memory_space<vmem>>, vector<1x128xf32>,
      } else {
      }
      %c8_i32 = arith.constant 8 : i32
      %9 = arith.muli %arg1, %c8_i32 : i32
      %10 = tpu.assume_multiple %9, 8 : i32
      %11 = arith.index_cast %10 : i32 to index
      %c0 = arith.constant 0 : index
      %12 = vector.load %arg14[%11, %c0] : memref<8x128xf32, #tpu.memory_space<vmem>>, vector<8x128xf32>
      %c0_4 = arith.constant 0 : index
      %c0_5 = arith.constant 0 : index
      %13 = vector.load %arg12[%c0_4, %c0_5] : memref<1x128xf32, #tpu.memory_space<vmem>>, vector<1x128xf32>
      %14 = vector.broadcast %13 : vector<1x128xf32> to vector<8x128xf32>
      %15 = arith.mulf %12, %14 : vector<8x128xf32>
      %c0_6 = arith.constant 0 : index
      %c0_7 = arith.constant 0 : index
      %16 = vector.load %arg13[%c0_6, %c0_7] : memref<1x128xf32, #tpu.memory_space<vmem>>, vector<1x128xf32>
      %17 = vector.broadcast %16 : vector<1x128xf32> to vector<8x128xf32>
      %18 = arith.addf %15, %17 : vector<8x128xf32>
      %cst = arith.constant 0.000000e+00 : f32
      %19 = vector.broadcast %cst : f32 to vector<8x128xf32>
      %20 = arith.maximumf %18, %19 : vector<8x128xf32>
      %c0_8 = arith.constant 0 : index
      %c0_9 = arith.constant 0 : index
      %21 = vector.load %arg7[%c0_8, %c0_9] : memref<8x128xf32, #tpu.memory_space<vmem>>, vector<8x128xf32>
      %cst_10 = arith.constant dense<0.000000e+00> : vector<8x8xf32>
      %22 = tpu.matmul %21, %20, %cst_10 {dimension_numbers = #tpu.dot_dimension_numbers<[1], [1], [0], [0], [0, 0, 1, 0], [], []>} : vector<8x128xf32>, vector<8x128xf32>, vector<8x8xf32> -> vector<8x8xf32>
      %23 = vector.extract_strided_slice %22 {offsets = [0, 0], sizes = [1, 8], strides = [1, 1]} : vector<8x8xf32> to vector<1x8xf32>
      %c0_11 = arith.constant 0 : index
      %c0_12 = arith.constant 0 : index
      %24 = vector.load %arg8[%c0_11, %c0_12] : memref<1x1xf32, #tpu.memory_space<vmem>>, vector<1x1xf32>
      %25 = vector.broadcast %24 : vector<1x1xf32> to vector<1x8xf32>
      %26 = arith.addf %23, %25 : vector<1x8xf32>
      %27 = vector.shape_cast %26 : vector<1x8xf32> to vector<1x1x8xf32>
      %c0_13 = arith.constant 0 : index
      %c0_14 = arith.constant 0 : index
      %c0_15 = arith.constant 0 : index
      %28 = vector.load %arg9[%c0_13, %c0_14, %c0_15] : memref<1x1x8xf32, #tpu.memory_space<vmem>>, vector<1x1x8xf32>
      tpu.vector_store %arg9[%c0_13, %c0_14, %c0_15], %27 {strides = array<i32>} : memref<1x1x8xf32, #tpu.memory_space<vmem>>, vector<1x1x8xf32>,
    } else {
    }
    return
  }
  func.func @transform_0(%arg0: i32, %arg1: i32) -> (i32, i32) {
    %c1_i32 = arith.constant 1 : i32
    %0 = arith.subi %c1_i32, %arg0 : i32
    %1 = arith.muli %arg1, %0 : i32
    %c0_i32 = arith.constant 0 : i32
    %c0_i32_0 = arith.constant 0 : i32
    return %1, %c0_i32 : i32, i32
  }
  func.func @transform_1(%arg0: i32, %arg1: i32) -> (i32, i32) {
    %c0_i32 = arith.constant 0 : i32
    %c0_i32_0 = arith.constant 0 : i32
    %c0_i32_1 = arith.constant 0 : i32
    return %c0_i32, %c0_i32_0 : i32, i32
  }
  func.func @transform_2(%arg0: i32, %arg1: i32) -> (i32, i32) {
    %c0_i32 = arith.constant 0 : i32
    %c0_i32_0 = arith.constant 0 : i32
    %c0_i32_1 = arith.constant 0 : i32
    return %c0_i32, %c0_i32_0 : i32, i32
  }
  func.func @transform_3(%arg0: i32, %arg1: i32) -> (i32, i32) {
    %c0_i32 = arith.constant 0 : i32
    %c0_i32_0 = arith.constant 0 : i32
    %c0_i32_1 = arith.constant 0 : i32
    return %c0_i32, %c0_i32_0 : i32, i32
  }
  func.func @transform_4(%arg0: i32, %arg1: i32) -> (i32, i32) {
    %c0_i32 = arith.constant 0 : i32
    %c0_i32_0 = arith.constant 0 : i32
    %c0_i32_1 = arith.constant 0 : i32
    return %c0_i32, %c0_i32_0 : i32, i32
  }
  func.func @transform_5(%arg0: i32, %arg1: i32) -> (i32, i32) {
    %c0_i32 = arith.constant 0 : i32
    %c0_i32_0 = arith.constant 0 : i32
    %c0_i32_1 = arith.constant 0 : i32
    return %c0_i32, %c0_i32_0 : i32, i32
  }
  func.func @transform_6(%arg0: i32, %arg1: i32) -> (i32, i32) {
    %c0_i32 = arith.constant 0 : i32
    %c0_i32_0 = arith.constant 0 : i32
    %c0_i32_1 = arith.constant 0 : i32
    return %c0_i32, %c0_i32_0 : i32, i32
  }
  func.func @transform_7(%arg0: i32, %arg1: i32) -> (i32, i32, i32) {
    %0 = arith.muli %arg1, %arg0 : i32
    %c0_i32 = arith.constant 0 : i32
    %c0_i32_0 = arith.constant 0 : i32
    %c0_i32_1 = arith.constant 0 : i32
    return %0, %c0_i32, %c0_i32_0 : i32, i32, i32
  }
}

</mosaic_0001>

<llo_original>
// kernel: tpu_custom_call.1
$region0: #{tpu_custom_call.1}
  #allocation0 [shape = 'u32[]', space=smem, size = 0x4, offset = 0x4, fixed_abs, tag = 'smem constant byte address 0x4 - core index']
  #allocation1 [shape = 'u32[144,128]{1,0:T(1,128)}', space=vmem, size = 0x12000, scoped, tag = 'internal scratch']
  #allocation2 [shape = 'f32[1,128]{1,0:T(1,128)}', space=vmem, size = 0x200, scoped, tag = 'scratch operand']
  #allocation3 [shape = 'f32[1,128]{1,0:T(1,128)}', space=vmem, size = 0x200, scoped, tag = 'scratch operand']
  #allocation4 [shape = 'f32[1,128]{1,0:T(1,128)}', space=vmem, size = 0x200, scoped, tag = 'scratch operand']
  #allocation5 [shape = 'f32[1,128]{1,0:T(1,128)}', space=vmem, size = 0x200, scoped, tag = 'scratch operand']
  #allocation6 [shape = 'f32[8,128]{1,0:T(8,128)}', space=vmem, size = 0x1000, scoped, tag = 'scratch operand']
  #allocation7 [shape = 'f32[1,1]{1,0:T(1,128)S(1)}', space=vmem, size = 0x200, scoped, tag = 'scoped memory for tpu_custom_call.1']
  %s0 = inlined_call_operand.hbm [shape: f32[8,32], index: 0, kind: input, shape index: {}]
  %s1 = inlined_call_operand.hbm [shape: f32[32,128], index: 1, kind: input, shape index: {}]
  %s2 = inlined_call_operand.vmem [shape: f32[1,128], index: 2, kind: input, shape index: {}]
  %s3 = inlined_call_operand.vmem [shape: f32[1,128], index: 3, kind: input, shape index: {}]
  %s4 = inlined_call_operand.vmem [shape: f32[1,128], index: 4, kind: input, shape index: {}]
  %s5 = inlined_call_operand.vmem [shape: f32[8,128], index: 5, kind: input, shape index: {}]
  %s6 = inlined_call_operand.<no memory space> [shape: f32[1,1], index: 6, kind: input, shape index: {}]
  %s7 = inlined_call_operand.hbm [shape: f32[1,1,8], index: 7, kind: output, shape index: {}]
  %s8 = sld [smem:[#allocation0]]
  $region85: #{tpu_custom_call.1} parent=0
    _
  %s10 = ssub.s32 1, %s8
  %s11 = scalar_select 0, %s10, %s8
  %v12 = vstv %s6
  %13 = vst [vmem:[#allocation7] sm:$0x1] %v12
  $region1: #{tpu_custom_call.1} parent=0
    #allocation8 [shape = 'u8[8192]{0}', space=vmem, size = 0x2000, scoped, tag = 'input window, operand 0']
    #allocation9 [shape = 's32[2]{0}', space=sflag, size = 0x8, scoped, tag = 'scoped memory for tpu_custom_call.1']
    #allocation10 [shape = 's32[2]{0}', space=sflag, size = 0x8, scoped, tag = 'scoped memory for tpu_custom_call.1']
    #allocation11 [shape = 'u8[16384]{0}', space=vmem, size = 0x4000, scoped, tag = 'input window, operand 1, single buffered']
    #allocation12 [shape = 's32[1]{0}', space=sflag, size = 0x4, scoped, tag = 'scoped memory for tpu_custom_call.1']
    #allocation13 [shape = 'u8[1024]{0}', space=vmem, size = 0x400, scoped, tag = 'output window, operand 0']
    %14 = vsyncpa [#allocation9], 0
    %s15 = scalar_lea.sflag [#allocation9], 1
    %16 = vsyncpa %s15, 0
    %17 = vsyncpa [#allocation12], 0
    %18 = vsyncpa [#allocation10], 0
    %s19 = scalar_lea.sflag [#allocation10], 1
    %20 = vsyncpa %s19, 0
    loop: start=0, step=1, limit=4
    $region2: #{tpu_custom_call.1} parent=1 // loop_pre_header
      _
    $region3: #{tpu_custom_call.1} parent=1 // loop_header
      %s22 = sphi 0, %s26
      %p23 = scmp.ge.s32.totalorder %s22, 4
      %s29 = sphi 0, %s41
      %s30 = sphi 0, %s37
      %s31 = sphi 0, %s29
      %s32 = sphi 0, %s30
      %s33 = sphi 0, %s31
      %s34 = sphi 0, %s32
      %s48 = sphi 0, %s50
      %s51 = sphi 0, %s48
      %s52 = sphi 0, %s51
      %s68 = sphi 0, %s52
      %s72 = sphi 0, %s72
      %s74 = sphi 0, %s72
      %s75 = sphi 0, %s74
      %s89 = sphi 0, %s75
      %s93 = sphi 0, %s93
      %s95 = sphi 0, %s93
      %s96 = sphi 0, %s95
      %s110 = sphi 0, %s96
      %s114 = sphi 0, %s114
      %s116 = sphi 0, %s114
      %s117 = sphi 0, %s116
      %s131 = sphi 0, %s117
      %s135 = sphi 0, %s135
      %s137 = sphi 0, %s135
      %s138 = sphi 0, %s137
      %s152 = sphi 0, %s138
      %s156 = sphi 0, %s156
      %s158 = sphi 0, %s156
      %s159 = sphi 0, %s158
      %s173 = sphi 0, %s159
      %s177 = sphi 0, %s177
      %s179 = sphi 0, %s177
      %s180 = sphi 0, %s179
      %s194 = sphi 0, %s180
      %s202 = sphi 0, %s204
      %s205 = sphi 0, %s202
      %s206 = sphi 0, %s205
      %s222 = sphi 0, %s206
    $region4: #{tpu_custom_call.1} parent=1 // loop_header_branch
      %25 = sbr.rel (%p23) target = $region8
    $region5: #{tpu_custom_call.1} parent=1 // loop_body
      %s27 = ssub.s32 %s22, 1
      %s28 = ssub.s32 %s22, 2
      %s35 = sadd.s32 1, %s30
      %p36 = scmp.ge.s32.totalorder %s35, 1
      %s37 = scalar_select %p36, 0, %s35
      %s38 = sadd.s32 1, %s29
      %s39 = scalar_select %p36, %s38, %s29
      %p40 = scmp.ge.s32.totalorder %s39, 2
      %s41 = scalar_select %p40, 0, %s39
      %s42 = ssub.s32 1, %s29
      %s43 = smul.u32 %s30, %s42
      %s44 = ssub.s32 1, %s41
      %s45 = smul.u32 %s37, %s44
      %s46 = ssub.s32 %s43, %s45
      %p47 = scmp.eq.s32.totalorder %s46, 0
      %s49 = sadd.s32 %s48, 1
      %s50 = scalar_select %p47, %s48, %s49
      %p53 = pneg %p47
      %p54 = scmp.eq.s32.totalorder %s22, 1
      %p55 = por %p53, %p54
      %p56 = scmp.ne.s32.totalorder %s48, %s51
      %p57 = scmp.eq.s32.totalorder %s22, 0
      %p58 = por %p56, %p57
      %p59 = scmp.ne.s32.totalorder %s48, %s51
      %p60 = scmp.eq.s32.totalorder %s27, 1
      %p61 = por %p59, %p60
      %p62 = scmp.ne.s32.totalorder %s51, %s52
      %p63 = scmp.eq.s32.totalorder %s27, 0
      %p64 = por %p62, %p63
      %p65 = scmp.ne.s32.totalorder %s51, %s52
      %p66 = scmp.eq.s32.totalorder %s28, 1
      %p67 = por %p65, %p66
      %p69 = scmp.ne.s32.totalorder %s52, %s68
      %p70 = scmp.eq.s32.totalorder %s28, 0
      %p71 = por %p69, %p70
      %s73 = sadd.s32 %s72, 1
      %p76 = scmp.eq.s32.totalorder %s22, 1
      %p77 = scmp.ne.s32.totalorder %s72, %s74
      %p78 = scmp.eq.s32.totalorder %s22, 0
      %p79 = por %p77, %p78
      %p80 = scmp.ne.s32.totalorder %s72, %s74
      %p81 = scmp.eq.s32.totalorder %s27, 1
      %p82 = por %p80, %p81
      %p83 = scmp.ne.s32.totalorder %s74, %s75
      %p84 = scmp.eq.s32.totalorder %s27, 0
      %p85 = por %p83, %p84
      %p86 = scmp.ne.s32.totalorder %s74, %s75
      %p87 = scmp.eq.s32.totalorder %s28, 1
      %p88 = por %p86, %p87
      %p90 = scmp.ne.s32.totalorder %s75, %s89
      %p91 = scmp.eq.s32.totalorder %s28, 0
      %p92 = por %p90, %p91
      %s94 = sadd.s32 %s93, 1
      %p97 = scmp.eq.s32.totalorder %s22, 1
      %p98 = scmp.ne.s32.totalorder %s93, %s95
      %p99 = scmp.eq.s32.totalorder %s22, 0
      %p100 = por %p98, %p99
      %p101 = scmp.ne.s32.totalorder %s93, %s95
      %p102 = scmp.eq.s32.totalorder %s27, 1
      %p103 = por %p101, %p102
      %p104 = scmp.ne.s32.totalorder %s95, %s96
      %p105 = scmp.eq.s32.totalorder %s27, 0
      %p106 = por %p104, %p105
      %p107 = scmp.ne.s32.totalorder %s95, %s96
      %p108 = scmp.eq.s32.totalorder %s28, 1
      %p109 = por %p107, %p108
      %p111 = scmp.ne.s32.totalorder %s96, %s110
      %p112 = scmp.eq.s32.totalorder %s28, 0
      %p113 = por %p111, %p112
      %s115 = sadd.s32 %s114, 1
      %p118 = scmp.eq.s32.totalorder %s22, 1
      %p119 = scmp.ne.s32.totalorder %s114, %s116
      %p120 = scmp.eq.s32.totalorder %s22, 0
      %p121 = por %p119, %p120
      %p122 = scmp.ne.s32.totalorder %s114, %s116
      %p123 = scmp.eq.s32.totalorder %s27, 1
      %p124 = por %p122, %p123
      %p125 = scmp.ne.s32.totalorder %s116, %s117
      %p126 = scmp.eq.s32.totalorder %s27, 0
      %p127 = por %p125, %p126
      %p128 = scmp.ne.s32.totalorder %s116, %s117
      %p129 = scmp.eq.s32.totalorder %s28, 1
      %p130 = por %p128, %p129
      %p132 = scmp.ne.s32.totalorder %s117, %s131
      %p133 = scmp.eq.s32.totalorder %s28, 0
      %p134 = por %p132, %p133
      %s136 = sadd.s32 %s135, 1
      %p139 = scmp.eq.s32.totalorder %s22, 1
      %p140 = scmp.ne.s32.totalorder %s135, %s137
      %p141 = scmp.eq.s32.totalorder %s22, 0
      %p142 = por %p140, %p141
      %p143 = scmp.ne.s32.totalorder %s135, %s137
      %p144 = scmp.eq.s32.totalorder %s27, 1
      %p145 = por %p143, %p144
      %p146 = scmp.ne.s32.totalorder %s137, %s138
      %p147 = scmp.eq.s32.totalorder %s27, 0
      %p148 = por %p146, %p147
      %p149 = scmp.ne.s32.totalorder %s137, %s138
      %p150 = scmp.eq.s32.totalorder %s28, 1
      %p151 = por %p149, %p150
      %p153 = scmp.ne.s32.totalorder %s138, %s152
      %p154 = scmp.eq.s32.totalorder %s28, 0
      %p155 = por %p153, %p154
      %s157 = sadd.s32 %s156, 1
      %p160 = scmp.eq.s32.totalorder %s22, 1
      %p161 = scmp.ne.s32.totalorder %s156, %s158
      %p162 = scmp.eq.s32.totalorder %s22, 0
      %p163 = por %p161, %p162
      %p164 = scmp.ne.s32.totalorder %s156, %s158
      %p165 = scmp.eq.s32.totalorder %s27, 1
      %p166 = por %p164, %p165
      %p167 = scmp.ne.s32.totalorder %s158, %s159
      %p168 = scmp.eq.s32.totalorder %s27, 0
      %p169 = por %p167, %p168
      %p170 = scmp.ne.s32.totalorder %s158, %s159
      %p171 = scmp.eq.s32.totalorder %s28, 1
      %p172 = por %p170, %p171
      %p174 = scmp.ne.s32.totalorder %s159, %s173
      %p175 = scmp.eq.s32.totalorder %s28, 0
      %p176 = por %p174, %p175
      %s178 = sadd.s32 %s177, 1
      %p181 = scmp.eq.s32.totalorder %s22, 1
      %p182 = scmp.ne.s32.totalorder %s177, %s179
      %p183 = scmp.eq.s32.totalorder %s22, 0
      %p184 = por %p182, %p183
      %p185 = scmp.ne.s32.totalorder %s177, %s179
      %p186 = scmp.eq.s32.totalorder %s27, 1
      %p187 = por %p185, %p186
      %p188 = scmp.ne.s32.totalorder %s179, %s180
      %p189 = scmp.eq.s32.totalorder %s27, 0
      %p190 = por %p188, %p189
      %p191 = scmp.ne.s32.totalorder %s179, %s180
      %p192 = scmp.eq.s32.totalorder %s28, 1
      %p193 = por %p191, %p192
      %p195 = scmp.ne.s32.totalorder %s180, %s194
      %p196 = scmp.eq.s32.totalorder %s28, 0
      %p197 = por %p195, %p196
      %s198 = smul.u32 %s30, %s29
      %s199 = smul.u32 %s37, %s41
      %s200 = ssub.s32 %s198, %s199
      %p201 = scmp.eq.s32.totalorder %s200, 0
      %s203 = sadd.s32 %s202, 1
      %s204 = scalar_select %p201, %s202, %s203
      %p207 = pneg %p201
      %p208 = scmp.eq.s32.totalorder %s22, 1
      %p209 = por %p207, %p208
      %p210 = scmp.ne.s32.totalorder %s202, %s205
      %p211 = scmp.eq.s32.totalorder %s22, 0
      %p212 = por %p210, %p211
      %p213 = scmp.ne.s32.totalorder %s202, %s205
      %p214 = scmp.eq.s32.totalorder %s27, 1
      %p215 = por %p213, %p214
      %p216 = scmp.ne.s32.totalorder %s205, %s206
      %p217 = scmp.eq.s32.totalorder %s27, 0
      %p218 = por %p216, %p217
      %p219 = scmp.ne.s32.totalorder %s205, %s206
      %p220 = scmp.eq.s32.totalorder %s28, 1
      %p221 = por %p219, %p220
      %p223 = scmp.ne.s32.totalorder %s206, %s222
      %p224 = scmp.eq.s32.totalorder %s28, 0
      %p225 = por %p223, %p224
      %p226 = scmp.le.s32.totalorder 1, %s22
      %p227 = scmp.lt.s32.totalorder %s22, 3
      %p228 = pnand %p226, %p227
      %p229 = pneg %p228
      // Predicated region
      $region9: #{tpu_custom_call.1} parent=5 // pred_check
        _
      $region10: #{tpu_custom_call.1} parent=5 // pred_check_branch
        %231 = sbr.rel (%p228) target = $region12
      $region11: #{tpu_custom_call.1} parent=5 // pred_region
        %s232 = ssub.s32 %s22, 1
        // Predicated region
        $region13: #{tpu_custom_call.1} parent=11 // pred_check
          %p233 = pneg %p85
        $region14: #{tpu_custom_call.1} parent=11 // pred_check_branch
          %235 = sbr.rel (%p233) target = $region16
        $region15: #{tpu_custom_call.1} parent=11 // pred_region
          %s237 = ssub.s32 512, 512
          %238 = vsyncadd [#allocation12], %s237
          %s239 = sshll.u32 [#allocation11], 4
          %s240 = int_to_ptr.vmem [resolvable:$true] %s239
          %245 = dma.hbm_to_vmem [thread:$0]  %s1, 512, %s240, [#allocation12], 128, 128, 8
        $region16: #{tpu_custom_call.1} parent=11 // pred_fallthru
          _
        // Predicated region
        $region17: #{tpu_custom_call.1} parent=11 // pred_check
          %p246 = pneg %p106
        $region18: #{tpu_custom_call.1} parent=11 // pred_check_branch
          %248 = sbr.rel (%p246) target = $region20
        $region19: #{tpu_custom_call.1} parent=11 // pred_region
          _
        $region20: #{tpu_custom_call.1} parent=11 // pred_fallthru
          _
        // Predicated region
        $region21: #{tpu_custom_call.1} parent=11 // pred_check
          %p249 = pneg %p127
        $region22: #{tpu_custom_call.1} parent=11 // pred_check_branch
          %251 = sbr.rel (%p249) target = $region24
        $region23: #{tpu_custom_call.1} parent=11 // pred_region
          _
        $region24: #{tpu_custom_call.1} parent=11 // pred_fallthru
          _
        // Predicated region
        $region25: #{tpu_custom_call.1} parent=11 // pred_check
          %p252 = pneg %p148
        $region26: #{tpu_custom_call.1} parent=11 // pred_check_branch
          %254 = sbr.rel (%p252) target = $region28
        $region27: #{tpu_custom_call.1} parent=11 // pred_region
          _
        $region28: #{tpu_custom_call.1} parent=11 // pred_fallthru
          _
        // Predicated region
        $region29: #{tpu_custom_call.1} parent=11 // pred_check
          %p255 = pneg %p169
        $region30: #{tpu_custom_call.1} parent=11 // pred_check_branch
          %257 = sbr.rel (%p255) target = $region32
        $region31: #{tpu_custom_call.1} parent=11 // pred_region
          _
        $region32: #{tpu_custom_call.1} parent=11 // pred_fallthru
          _
        // Predicated region
        $region33: #{tpu_custom_call.1} parent=11 // pred_check
          %p258 = pneg %p190
        $region34: #{tpu_custom_call.1} parent=11 // pred_check_branch
          %260 = sbr.rel (%p258) target = $region36
        $region35: #{tpu_custom_call.1} parent=11 // pred_region
          _
        $region36: #{tpu_custom_call.1} parent=11 // pred_fallthru
          _
      $region12: #{tpu_custom_call.1} parent=5 // pred_fallthru
        _
      %p261 = scmp.lt.s32.totalorder %s22, 2
      // Predicated region
      $region37: #{tpu_custom_call.1} parent=5 // pred_check
        %p262 = pneg %p261
      $region38: #{tpu_custom_call.1} parent=5 // pred_check_branch
        %264 = sbr.rel (%p262) target = $region40
      $region39: #{tpu_custom_call.1} parent=5 // pred_region
        // Predicated region
        $region41: #{tpu_custom_call.1} parent=39 // pred_check
          %p265 = pneg %p58
        $region42: #{tpu_custom_call.1} parent=39 // pred_check_branch
          %267 = sbr.rel (%p265) target = $region44
        $region43: #{tpu_custom_call.1} parent=39 // pred_region
          %s268 = sand.u32 %s48, 1
          %s269 = scalar_lea.sflag [#allocation9], %s268
          %s270 = sand.u32 %s48, 1
          %s271 = smul.addr %s270, 8
          %s272 = scalar_lea.vmem [#allocation8], %s271
          %s273 = ssub.s32 1, %s29
          %s274 = smul.u32 %s30, %s273
          %s276 = ssub.s32 128, 128
          %277 = vsyncadd %s269, %s276
          %s278 = smul.addr %s274, 128
          %s279 = scalar_lea.hbm %s0, %s278
          %s281 = sshll.u32 %s272, 4
          %s282 = int_to_ptr.vmem [resolvable:$true] %s281
          %284 = dma.hbm_to_vmem [thread:$0]  %s279, 128, %s282, %s269
        $region44: #{tpu_custom_call.1} parent=39 // pred_fallthru
          _
      $region40: #{tpu_custom_call.1} parent=5 // pred_fallthru
        _
      %p285 = scmp.le.s32.totalorder 1, %s22
      %p286 = scmp.lt.s32.totalorder %s22, 3
      %p287 = pnand %p285, %p286
      %p288 = pneg %p287
      // Predicated region
      $region45: #{tpu_custom_call.1} parent=5 // pred_check
        _
      $region46: #{tpu_custom_call.1} parent=5 // pred_check_branch
        %290 = sbr.rel (%p287) target = $region48
      $region47: #{tpu_custom_call.1} parent=5 // pred_region
        %s291 = ssub.s32 %s22, 1
        %s292 = sand.u32 %s51, 1
        %s293 = scalar_lea.sflag [#allocation9], %s292
        %s294 = sand.u32 %s51, 1
        %s295 = smul.addr %s294, 8
        %s296 = scalar_lea.vmem [#allocation8], %s295
        // Predicated region
        $region49: #{tpu_custom_call.1} parent=47 // pred_check
          %p297 = pneg %p64
        $region50: #{tpu_custom_call.1} parent=47 // pred_check_branch
          %299 = sbr.rel (%p297) target = $region52
        $region51: #{tpu_custom_call.1} parent=47 // pred_region
          %300 = dma.done %s293, 128
        $region52: #{tpu_custom_call.1} parent=47 // pred_fallthru
          _
        // Predicated region
        $region53: #{tpu_custom_call.1} parent=47 // pred_check
          %p301 = pneg %p85
        $region54: #{tpu_custom_call.1} parent=47 // pred_check_branch
          %303 = sbr.rel (%p301) target = $region56
        $region55: #{tpu_custom_call.1} parent=47 // pred_region
          %304 = dma.done [#allocation12], 512
        $region56: #{tpu_custom_call.1} parent=47 // pred_fallthru
          _
        %s305 = sand.u32 %s51, 1
        %s306 = scalar_lea.sflag [#allocation9], %s305
        %s307 = sand.u32 %s51, 1
        %s308 = smul.addr %s307, 8
        %s309 = scalar_lea.vmem [#allocation8], %s308
        %p310 = pneg %p64
        %p311 = pneg %p61
        %p312 = pneg %p85
        %p313 = pneg %p82
        %p314 = pneg %p106
        %p315 = pneg %p103
        %p316 = pneg %p127
        %p317 = pneg %p124
        %p318 = pneg %p148
        %p319 = pneg %p145
        %p320 = pneg %p169
        %p321 = pneg %p166
        %p322 = pneg %p190
        %p323 = pneg %p187
        %p324 = pneg %p218
        %p325 = pneg %p215
        %s326 = sand.u32 %s205, 1
        %s327 = scalar_lea.sflag [#allocation10], %s326
        %s328 = sand.u32 %s205, 1
        %s329 = scalar_lea.vmem [#allocation13], %s328
        %s330 = ssub.s32 1, %s31
        %s331 = smul.u32 %s32, %s330
        %s332 = smul.u32 %s32, %s31
        %p333 = scmp.eq.s32.totalorder %s31, 0
        // Predicated region
        $region57: #{tpu_custom_call.1} parent=47 // pred_check
          %p334 = pneg %p333
        $region58: #{tpu_custom_call.1} parent=47 // pred_check_branch
          %336 = sbr.rel (%p334) target = $region60
        $region59: #{tpu_custom_call.1} parent=47 // pred_region
          %v337 = vld [vmem:[%s296] sm:$0xff]
          %v338 = vld [vmem:[#allocation11] sm:$0xff]
          %v339 = vld [vmem:[#allocation11 + $0x8] sm:$0xff]
          %v340 = vld [vmem:[#allocation11 + $0x10] sm:$0xff]
          %v341 = vld [vmem:[#allocation11 + $0x18] sm:$0xff]
          %v342 = vld [vmem:[%s2] sm:$0x1]
          %v344 = vlaneseq
          %v345 = vshrl.u32 %v344, 7
          %v346 = vsub.s32 0, %v345
          %v347 = vrot.slane %v342, %v346
          %vm349 = vcmask 261120
          %v351 = vsel %vm349, %v337, 0
          %353 = vmatprep.subr.mxu0 0.0
          %354 = vmatpush1.msra.mxu0 %v338
          %355 = vmatprep.subr.mxu0 0.0
          %356 = vmatpush1.msra.mxu0 %v339
          %357 = vmatprep.subr.mxu0 0.0
          %358 = vmatpush1.msra.mxu0 %v340
          %359 = vmatprep.subr.mxu0 0.0
          %360 = vmatpush1.msra.mxu0 %v341
          %361 = vmatprep.subr.mxu0 0.0
          %362 = vmatpush1.msra.mxu0 0.0
          %363 = vmatprep.subr.mxu0 0.0
          %364 = vmatpush1.msra.mxu0 0.0
          %365 = vmatprep.subr.mxu0 0.0
          %366 = vmatpush1.msra.mxu0 0.0
          %367 = vmatprep.subr.mxu0 0.0
          %368 = vmatpush1.msra.mxu0 0.0
          %369 = vmatprep.subr.mxu0 0.0
          %370 = vmatpush1.msra.mxu0 0.0
          %371 = vmatprep.subr.mxu0 0.0
          %372 = vmatpush1.msra.mxu0 0.0
          %373 = vmatprep.subr.mxu0 0.0
          %374 = vmatpush1.msra.mxu0 0.0
          %375 = vmatprep.subr.mxu0 0.0
          %376 = vmatpush1.msra.mxu0 0.0
          %377 = vmatprep.subr.mxu0 0.0
          %378 = vmatpush1.msra.mxu0 0.0
          %379 = vmatprep.subr.mxu0 0.0
          %380 = vmatpush1.msra.mxu0 0.0
          %381 = vmatprep.subr.mxu0 0.0
          %382 = vmatpush1.msra.mxu0 0.0
          %383 = vmatprep.subr.mxu0 0.0
          %384 = vmatpush1.msra.mxu0 0.0
          %385 = vmatprep.subr.mxu0 0.0
          %386 = vmatpush1.msra.mxu0 0.0
          %387 = vmatprep.subr.mxu0 0.0
          %388 = vmatpush1.msra.mxu0 0.0
          %389 = vmatprep.subr.mxu0 0.0
          %390 = vmatpush1.msra.mxu0 0.0
          %391 = vmatprep.subr.mxu0 0.0
          %392 = vmatpush1.msra.mxu0 0.0
          %393 = vmatprep.subr.mxu0 0.0
          %394 = vmatpush1.msra.mxu0 0.0
          %395 = vmatprep.subr.mxu0 0.0
          %396 = vmatpush1.msra.mxu0 0.0
          %397 = vmatprep.subr.mxu0 0.0
          %398 = vmatpush1.msra.mxu0 0.0
          %399 = vmatprep.subr.mxu0 0.0
          %400 = vmatpush1.msra.mxu0 0.0
          %401 = vmatprep.subr.mxu0 0.0
          %402 = vmatpush1.msra.mxu0 0.0
          %403 = vmatprep.subr.mxu0 0.0
          %404 = vmatpush1.msra.mxu0 0.0
          %405 = vmatprep.subr.mxu0 0.0
          %406 = vmatpush1.msra.mxu0 0.0
          %407 = vmatprep.subr.mxu0 0.0
          %408 = vmatpush1.msra.mxu0 0.0
          %409 = vmatprep.subr.mxu0 0.0
          %410 = vmatpush1.msra.mxu0 0.0
          %411 = vmatprep.subr.mxu0 0.0
          %412 = vmatpush1.msra.mxu0 0.0
          %413 = vmatprep.subr.mxu0 0.0
          %414 = vmatpush1.msra.mxu0 0.0
          %415 = vmatprep.subr.mxu0 0.0
          %416 = vmatpush1.msra.mxu0 0.0
          %417 = vmatprep.mubr.f32.mxu0 0.0
          %418 = vmatmul.mubr.f32.gmra.mrb[0].mxu0 %v351
          %v419 = vpop.f32.mrb[0].mxu0
          %v420 = vadd.f32 %v347, %v419
          %v421 = vpop.f32.mrb[0].mxu0
          %422 = vdwg.mxu0
          %p423 = scmp.eq.s32.totalorder %s32, 0
          // Predicated region
          $region61: #{tpu_custom_call.1} parent=59 // pred_check
            %p424 = pneg %p423
          $region62: #{tpu_custom_call.1} parent=59 // pred_check_branch
            %426 = sbr.rel (%p424) target = $region64
          $region63: #{tpu_custom_call.1} parent=59 // pred_region
            %427 = vst [vmem:[#allocation2] sm:$0x1] 0.0
            %428 = vst [vmem:[#allocation3] sm:$0x1] 0.0
          $region64: #{tpu_custom_call.1} parent=59 // pred_fallthru
            _
          %v429 = vld [vmem:[#allocation2] sm:$0x1]
          %v430 = vrot.slane %v420, 4
          %v431 = vadd.f32 %v420, %v430
          %v432 = vrot.slane %v431, 2
          %v433 = vadd.f32 %v431, %v432
          %v434 = vrot.slane %v433, 1
          %v435 = vadd.f32 %v433, %v434
          %v436 = vadd.f32 %v429, %v435
          %437 = vst [vmem:[#allocation2] sm:$0x1] %v436
          %v438 = vld [vmem:[#allocation3] sm:$0x1]
          %v439 = vmul.f32 %v420, %v420
          %v440 = vrot.slane %v439, 4
          %v441 = vadd.f32 %v439, %v440
          %v442 = vrot.slane %v441, 2
          %v443 = vadd.f32 %v441, %v442
          %v444 = vrot.slane %v443, 1
          %v445 = vadd.f32 %v443, %v444
          %v446 = vadd.f32 %v438, %v445
          %447 = vst [vmem:[#allocation3] sm:$0x1] %v446
          %s448 = smul.u32 %s32, 8
          %s449 = scalar_lea.vmem [#allocation6], %s448
          %450 = vst [vmem:[%s449] sm:$0xff] %v420
        $region60: #{tpu_custom_call.1} parent=47 // pred_fallthru
          _
        %p451 = scmp.eq.s32.totalorder %s31, 1
        // Predicated region
        $region65: #{tpu_custom_call.1} parent=47 // pred_check
          %p452 = pneg %p451
        $region66: #{tpu_custom_call.1} parent=47 // pred_check_branch
          %454 = sbr.rel (%p452) target = $region68
        $region67: #{tpu_custom_call.1} parent=47 // pred_region
          %p455 = scmp.eq.s32.totalorder %s32, 0
          // Predicated region
          $region69: #{tpu_custom_call.1} parent=67 // pred_check
            %p456 = pneg %p455
          $region70: #{tpu_custom_call.1} parent=67 // pred_check_branch
            %458 = sbr.rel (%p456) target = $region72
          $region71: #{tpu_custom_call.1} parent=67 // pred_region
            %v459 = vld [vmem:[%s2] sm:$0x1]
            %v460 = vld [vmem:[#allocation2] sm:$0x1]
            %v461 = vmul.f32 %v459, 0.0
            %v462 = vsub.f32 %v460, %v461
            %v463 = vld [vmem:[#allocation3] sm:$0x1]
            %v464 = vmul.f32 %v459, %v459
            %v465 = vmul.f32 %v464, 0.0
            %v466 = vsub.f32 %v463, %v465
            %v467 = vmul.f32 %v462, 0.125
            %v468 = vmul.f32 %v466, 0.125
            %v469 = vmul.f32 %v467, %v467
            %v470 = vsub.f32 %v468, %v469
            %v471 = vmax.f32 %v470, 0.0
            %v472 = vld [vmem:[%s3] sm:$0x1]
            %v473 = vadd.f32 %v471, 1e-05
            %v474 = vrsqrt.pop %v473
            %v475 = vmul.f32 %v472, %v474
            %476 = vst [vmem:[#allocation4] sm:$0x1] %v475
            %v477 = vld [vmem:[%s4] sm:$0x1]
            %v478 = vmul.f32 %v467, %v475
            %v479 = vsub.f32 %v477, %v478
            %480 = vst [vmem:[#allocation5] sm:$0x1] %v479
          $region72: #{tpu_custom_call.1} parent=67 // pred_fallthru
            _
          %s481 = smul.u32 %s32, 8
          %s482 = scalar_lea.vmem [#allocation6], %s481
          %v483 = vld [vmem:[%s482] sm:$0xff]
          %v484 = vld [vmem:[#allocation4] sm:$0x1]
          %v486 = vlaneseq
          %v487 = vshrl.u32 %v486, 7
          %v488 = vsub.s32 0, %v487
          %v489 = vrot.slane %v484, %v488
          %v491 = vmul.f32 %v483, %v489
          %v492 = vld [vmem:[#allocation5] sm:$0x1]
          %v494 = vlaneseq
          %v495 = vshrl.u32 %v494, 7
          %v496 = vsub.s32 0, %v495
          %v497 = vrot.slane %v492, %v496
          %v499 = vadd.f32 %v491, %v497
          %v500 = vmax.f32 %v499, 0.0
          %v501 = vld [vmem:[%s5] sm:$0xff]
          %502 = vmatprep.subr.mxu0 0.0
          %503 = vmatpush1.xpose.msra.mxu0 %v500
          %504 = vmatprep.subr.mxu0 0.0
          %505 = vmatpush1.xpose.msra.mxu0 0.0
          %506 = vmatprep.subr.mxu0 0.0
          %507 = vmatpush1.xpose.msra.mxu0 0.0
          %508 = vmatprep.subr.mxu0 0.0
          %509 = vmatpush1.xpose.msra.mxu0 0.0
          %510 = vmatprep.subr.mxu0 0.0
          %511 = vmatpush1.xpose.msra.mxu0 0.0
          %512 = vmatprep.subr.mxu0 0.0
          %513 = vmatpush1.xpose.msra.mxu0 0.0
          %514 = vmatprep.subr.mxu0 0.0
          %515 = vmatpush1.xpose.msra.mxu0 0.0
          %516 = vmatprep.subr.mxu0 0.0
          %517 = vmatpush1.xpose.msra.mxu0 0.0
          %518 = vmatprep.subr.mxu0 0.0
          %519 = vmatpush1.xpose.msra.mxu0 0.0
          %520 = vmatprep.subr.mxu0 0.0
          %521 = vmatpush1.xpose.msra.mxu0 0.0
          %522 = vmatprep.subr.mxu0 0.0
          %523 = vmatpush1.xpose.msra.mxu0 0.0
          %524 = vmatprep.subr.mxu0 0.0
          %525 = vmatpush1.xpose.msra.mxu0 0.0
          %526 = vmatprep.subr.mxu0 0.0
          %527 = vmatpush1.xpose.msra.mxu0 0.0
          %528 = vmatprep.subr.mxu0 0.0
          %529 = vmatpush1.xpose.msra.mxu0 0.0
          %530 = vmatprep.subr.mxu0 0.0
          %531 = vmatpush1.xpose.msra.mxu0 0.0
          %532 = vmatprep.subr.mxu0 0.0
          %533 = vmatpush1.xpose.msra.mxu0 0.0
          %534 = vmatprep.subr.mxu0 0.0
          %535 = vmatpush1.xpose.msra.mxu0 0.0
          %536 = vmatprep.subr.mxu0 0.0
          %537 = vmatpush1.xpose.msra.mxu0 0.0
          %538 = vmatprep.subr.mxu0 0.0
          %539 = vmatpush1.xpose.msra.mxu0 0.0
          %540 = vmatprep.subr.mxu0 0.0
          %541 = vmatpush1.xpose.msra.mxu0 0.0
          %542 = vmatprep.subr.mxu0 0.0
          %543 = vmatpush1.xpose.msra.mxu0 0.0
          %544 = vmatprep.subr.mxu0 0.0
          %545 = vmatpush1.xpose.msra.mxu0 0.0
          %546 = vmatprep.subr.mxu0 0.0
          %547 = vmatpush1.xpose.msra.mxu0 0.0
          %548 = vmatprep.subr.mxu0 0.0
          %549 = vmatpush1.xpose.msra.mxu0 0.0
          %550 = vmatprep.subr.mxu0 0.0
          %551 = vmatpush1.xpose.msra.mxu0 0.0
          %552 = vmatprep.subr.mxu0 0.0
          %553 = vmatpush1.xpose.msra.mxu0 0.0
          %554 = vmatprep.subr.mxu0 0.0
          %555 = vmatpush1.xpose.msra.mxu0 0.0
          %556 = vmatprep.subr.mxu0 0.0
          %557 = vmatpush1.xpose.msra.mxu0 0.0
          %558 = vmatprep.subr.mxu0 0.0
          %559 = vmatpush1.xpose.msra.mxu0 0.0
          %560 = vmatprep.subr.mxu0 0.0
          %561 = vmatpush1.xpose.msra.mxu0 0.0
          %562 = vmatprep.subr.mxu0 0.0
          %563 = vmatpush1.xpose.msra.mxu0 0.0
          %564 = vmatprep.subr.mxu0 0.0
          %565 = vmatpush1.xpose.msra.mxu0 0.0
          %566 = vmatprep.mubr.f32.mxu0 0.0
          %567 = vmatmul.mubr.f32.gmra.mrb[0].mxu0 %v501
          %v568 = vpop.f32.mrb[0].mxu0
          %v569 = vadd.f32 0.0, %v568
          %v570 = vpop.f32.mrb[0].mxu0
          %571 = vdwg.mxu0
          %v572 = vld [vmem:[#allocation7] sm:$0x1]
          %574 = vset.pattern.permute.xlu0 0
          %575 = vperm.xlu0 %574, %v572
          %v576 = vpop.permute.xlu0 %575
          %v578 = vlaneseq
          %v579 = vshrl.u32 %v578, 7
          %v580 = vsub.s32 0, %v579
          %v581 = vrot.slane %v576, %v580
          %v582 = vadd.f32 %v569, %v581
          %vm583 = vcmask 57344
          %584 = vst.msk [vmem:[%s329] sm:$0x1] %vm583, %v582
        $region68: #{tpu_custom_call.1} parent=47 // pred_fallthru
          _
        %s585 = sand.u32 %s205, 1
        %s586 = scalar_lea.sflag [#allocation10], %s585
        %s587 = sand.u32 %s205, 1
        %s588 = scalar_lea.vmem [#allocation13], %s587
        // Predicated region
        $region73: #{tpu_custom_call.1} parent=47 // pred_check
          %p589 = pneg %p215
        $region74: #{tpu_custom_call.1} parent=47 // pred_check_branch
          %591 = sbr.rel (%p589) target = $region76
        $region75: #{tpu_custom_call.1} parent=47 // pred_region
          %s592 = smul.u32 %s32, %s31
          %s594 = ssub.s32 16, 16
          %595 = vsyncadd %s586, %s594
          %s596 = smul.addr %s592, 16
          %s597 = scalar_lea.hbm %s7, %s596
          %s599 = sshll.u32 %s588, 4
          %s600 = int_to_ptr.vmem [resolvable:$true] %s599
          %602 = dma.vmem_to_hbm [thread:$0]  %s600, 16, %s597, %s586
        $region76: #{tpu_custom_call.1} parent=47 // pred_fallthru
          _
      $region48: #{tpu_custom_call.1} parent=5 // pred_fallthru
        _
      %p603 = scmp.le.s32.totalorder 2, %s22
      // Predicated region
      $region77: #{tpu_custom_call.1} parent=5 // pred_check
        %p604 = pneg %p603
      $region78: #{tpu_custom_call.1} parent=5 // pred_check_branch
        %606 = sbr.rel (%p604) target = $region80
      $region79: #{tpu_custom_call.1} parent=5 // pred_region
        %s607 = ssub.s32 %s22, 2
        // Predicated region
        $region81: #{tpu_custom_call.1} parent=79 // pred_check
          %p608 = pneg %p221
        $region82: #{tpu_custom_call.1} parent=79 // pred_check_branch
          %610 = sbr.rel (%p608) target = $region84
        $region83: #{tpu_custom_call.1} parent=79 // pred_region
          %s611 = sand.u32 %s206, 1
          %s612 = scalar_lea.sflag [#allocation10], %s611
          %s613 = sand.u32 %s206, 1
          %s614 = scalar_lea.vmem [#allocation13], %s613
          %615 = dma.done %s612, 16
        $region84: #{tpu_custom_call.1} parent=79 // pred_fallthru
          _
      $region80: #{tpu_custom_call.1} parent=5 // pred_fallthru
        _
    $region6: #{tpu_custom_call.1} parent=1 // loop_footer
      %s26 = sadd.s32 1, %s22
    $region7: #{tpu_custom_call.1} parent=1 // loop_footer_branch
      %21 = sbr.rel target = $region3
    $region8: #{tpu_custom_call.1} parent=1 // loop_exit
      _
    %616 = vsyncpa [#allocation9], 1
    %s617 = scalar_lea.sflag [#allocation9], 1
    %618 = vsyncpa %s617, 1
    %619 = vsyncpa [#allocation12], 1
    %620 = vsyncpa [#allocation10], 1
    %s621 = scalar_lea.sflag [#allocation10], 1
    %622 = vsyncpa %s621, 1

</llo_original>
